<compile_context>
chip_gen: v7x
topology: tpu7x:2x2x1
jax: 0.10.0
libtpu: 0.0.40
codegen_flags: <defaults>
</compile_context>

<pallas_src>
import functools

import jax
import jax.numpy as jnp
import numpy as np
from jax.experimental import pallas as pl
from jax.experimental.pallas import tpu as pltpu

BN_EPS = 1e-5
_LANE = 128


def _round_up(v, m):
    return ((v + m - 1) // m) * m


def _nbytes(shape, dtype):
    size = 1
    for s in shape:
        size *= s
    return int(size * np.dtype(dtype).itemsize)


def _vmem_capacity_bytes():
    """Physical VMEM of the local TPU (64 MiB on v7x, 128 MiB on v5e/v6e)."""
    try:
        cap = getattr(pltpu.get_tpu_info(), "vmem_capacity_bytes", None)
        if cap:
            return int(cap)
    except Exception:
        pass
    return 64 * 1024 * 1024  # conservative default (v7x per-TensorCore VMEM)


def _resident_spec(block_shape, index_map, single_buffer=True):
    """BlockSpec for operands whose block never changes across the grid.

    Requests single buffering (pl.Buffered(1)) so the pipeline does not keep a
    useless second copy of the weights in VMEM (frees room for larger row
    tiles, which matters most on v7x's 64 MiB VMEM).  Falls back to the
    default spec if pipeline_mode is unavailable in this JAX version.
    """
    if single_buffer:
        try:
            return pl.BlockSpec(block_shape, index_map,
                                pipeline_mode=pl.Buffered(1))
        except Exception:
            pass
    return pl.BlockSpec(block_shape, index_map)


# --------------------------------------------------------------------------
# Fused single-kernel path: Linear1 -> BatchNorm (two-pass stats) -> Linear2
# --------------------------------------------------------------------------
def _fused_kernel(x_ref, w1_ref, b1_ref, gamma_ref, beta_ref, w2_ref, b2_ref,
                  o_ref, *, n_valid, n_pad, mxu_dtype):
    b1 = b1_ref[...]
    h = jnp.dot(x_ref[...], w1_ref[...],
                preferred_element_type=jnp.float32) + b1          # (N_p,H_p) f32

    # Batch statistics over the true batch.  Padded x rows are exactly zero,
    # so padded h rows equal b1 exactly: remove their contribution in closed
    # form (no per-row masking / full-tile VPU work).
    inv_n = 1.0 / n_valid
    col_sum = jnp.sum(h, axis=0, keepdims=True) - n_pad * b1
    mean = col_sum * inv_n
    hc = h - mean                                                  # centered
    pad_c = b1 - mean
    m2 = jnp.sum(hc * hc, axis=0, keepdims=True) - n_pad * (pad_c * pad_c)
    var = jnp.maximum(m2 * inv_n, 0.0)                             # biased var

    scale = gamma_ref[...] * jax.lax.rsqrt(var + BN_EPS)
    h_n = hc * scale + beta_ref[...]

    out = jnp.dot(h_n.astype(mxu_dtype), w2_ref[...].astype(mxu_dtype),
                  preferred_element_type=jnp.float32) + b2_ref[...]
    o_ref[...] = out.astype(o_ref.dtype)


# --------------------------------------------------------------------------
# Two-stage row-tiled path
# Stage 1: h = x @ W1 + b1 plus per-tile partial statistics (fully parallel).
# --------------------------------------------------------------------------
def _stage1_kernel(x_ref, w1_ref, b1_ref, h_ref, sum_ref, m2_ref):
    h = jnp.dot(x_ref[...], w1_ref[...],
                preferred_element_type=jnp.float32) + b1_ref[...]
    h_ref[...] = h.astype(h_ref.dtype)

    # Statistics of exactly the values stage 2 will read back (matters for the
    # bf16 path), centered per tile for numerical stability.
    hs = h.astype(h_ref.dtype).astype(jnp.float32)
    tile_rows = hs.shape[0]
    tsum = jnp.sum(hs, axis=0, keepdims=True)
    tmean = tsum * (1.0 / tile_rows)
    d = hs - tmean
    tm2 = jnp.sum(d * d, axis=0, keepdims=True)
    sum_ref[...] = tsum.reshape(sum_ref.shape)
    m2_ref[...] = tm2.reshape(m2_ref.shape)


# Stage 2: out = h @ (W2 * bn_scale) + folded bias (BN folded into the matmul).
def _stage2_kernel(h_ref, w2_ref, b2_ref, o_ref):
    out = jnp.dot(h_ref[...], w2_ref[...],
                  preferred_element_type=jnp.float32) + b2_ref[...]
    o_ref[...] = out.astype(o_ref.dtype)


# --------------------------------------------------------------------------
# One-time parameter preparation (NOT per forward call): transpose PyTorch
# nn.Linear weights to (in_features, out_features) and pad to 128 lanes.
# --------------------------------------------------------------------------
def prepare_params(params, compute_dtype=jnp.float32):
    """compute_dtype=bfloat16 enables the bf16 MXU-operand fast path (valid on
    v5e/v6e/v7x; accumulation and all BN statistics stay f32)."""
    w1, b1 = params["w1"], params["b1"]
    gamma, beta = params["gamma"], params["beta"]
    w2, b2 = params["w2"], params["b2"]

    hidden, d_in = w1.shape
    d_out = w2.shape[0]
    # 128-lane padding.  (Padding to 256 only pays off for MXU-bound shapes on
    # v6e/v7x; not worth the extra HBM bytes for typical dims here.)
    d_in_p = _round_up(d_in, _LANE)
    h_p = _round_up(hidden, _LANE)
    d_out_p = _round_up(d_out, _LANE)

    def pad2(a, rows, cols):
        return jnp.pad(a, ((0, rows - a.shape[0]), (0, cols - a.shape[1])))

    return {
        "w1_t": pad2(w1.T, d_in_p, h_p).astype(compute_dtype),
        "w2_t": pad2(w2.T, h_p, d_out_p).astype(jnp.float32),  # f32 master copy
        "b1": pad2(b1.reshape(1, -1), 1, h_p).astype(jnp.float32),
        "b2": pad2(b2.reshape(1, -1), 1, d_out_p).astype(jnp.float32),
        "gamma": pad2(gamma.reshape(1, -1), 1, h_p).astype(jnp.float32),
        "beta": pad2(beta.reshape(1, -1), 1, h_p).astype(jnp.float32),
        "dims": (d_in, hidden, d_out),
        "compute_dtype": compute_dtype,
    }


def _stage_vmem_bytes(tile_n, d_in_p, h_p, d_out_p, cdt, out_dtype,
                      single_buffer=True):
    """Explicit VMEM budgets for the two tiled stages, including the in-kernel
    f32 intermediates (dot result + centered temporaries)."""
    wcopies = 1 if single_buffer else 2
    s1 = (2 * _nbytes((tile_n, d_in_p), cdt) + 2 * _nbytes((tile_n, h_p), cdt)
          + wcopies * _nbytes((d_in_p, h_p), cdt)
          + 3 * _nbytes((tile_n, h_p), jnp.float32)
          + 8 * _nbytes((1, h_p), jnp.float32) + (4 << 20))
    s2 = (2 * _nbytes((tile_n, h_p), cdt)
          + 2 * _nbytes((tile_n, d_out_p), out_dtype)
          + wcopies * _nbytes((h_p, d_out_p), cdt)
          + _nbytes((tile_n, d_out_p), jnp.float32)
          + 4 * _nbytes((1, d_out_p), jnp.float32) + (4 << 20))
    return int(s1), int(s2)


def _forward_fused(x_p, prepared, n, n_p, out_dtype):
    d_out = prepared["dims"][2]
    cdt = prepared["compute_dtype"]
    d_in_p, h_p = prepared["w1_t"].shape
    d_out_p = prepared["w2_t"].shape[1]
    cap = _vmem_capacity_bytes()

    flops = 2 * n_p * d_in_p * h_p + 2 * n_p * h_p * d_out_p
    bytes_accessed = (_nbytes((n_p, d_in_p), cdt) + _nbytes((d_in_p, h_p), cdt)
                      + _nbytes((h_p, d_out_p), jnp.float32)
                      + 4 * _nbytes((1, h_p), jnp.float32)
                      + _nbytes((1, d_out_p), jnp.float32)
                      + _nbytes((n_p, d_out_p), out_dtype))
    vmem_limit = int(min(max(bytes_accessed
                             + 5 * _nbytes((n_p, h_p), jnp.float32) + (4 << 20),
                             32 << 20),
                         cap - (8 << 20)))

    out = pl.pallas_call(
        functools.partial(_fused_kernel, n_valid=float(n),
                          n_pad=float(n_p - n), mxu_dtype=cdt),
        out_shape=jax.ShapeDtypeStruct((n_p, d_out_p), out_dtype),
        compiler_params=pltpu.CompilerParams(vmem_limit_bytes=vmem_limit),
        cost_estimate=pl.CostEstimate(flops=int(flops), transcendentals=int(h_p),
                                      bytes_accessed=int(bytes_accessed)),
    )(x_p, prepared["w1_t"], prepared["b1"], prepared["gamma"],
      prepared["beta"], prepared["w2_t"], prepared["b2"])
    return out[:n, :d_out]


def _forward_two_stage(x_p, prepared, n, n_p, tile_n, out_dtype,
                       single_buffer_weights=True):
    d_out = prepared["dims"][2]
    cdt = prepared["compute_dtype"]
    d_in_p, h_p = prepared["w1_t"].shape
    d_out_p = prepared["w2_t"].shape[1]
    grid_n = n_p // tile_n
    cap = _vmem_capacity_bytes()

    s1_vmem, s2_vmem = _stage_vmem_bytes(tile_n, d_in_p, h_p, d_out_p, cdt,
                                         out_dtype, single_buffer_weights)
    clamp = lambda v: int(min(max(v, 16 << 20), cap - (8 << 20)))
    s1_vmem, s2_vmem = clamp(s1_vmem), clamp(s2_vmem)

    # ---- Stage 1: Linear1 + per-tile partial statistics (fully parallel) ----
    s1_cost = pl.CostEstimate(
        flops=int(2 * n_p * d_in_p * h_p), transcendentals=0,
        bytes_accessed=int(_nbytes((n_p, d_in_p), cdt)
                           + _nbytes((d_in_p, h_p), cdt)
                           + _nbytes((n_p, h_p), cdt)
                           + 2 * _nbytes((grid_n, 1, h_p), jnp.float32)))
    h, tile_sum, tile_m2 = pl.pallas_call(
        _stage1_kernel,
        out_shape=(
            jax.ShapeDtypeStruct((n_p, h_p), cdt),
            jax.ShapeDtypeStruct((grid_n, 1, h_p), jnp.float32),
            jax.ShapeDtypeStruct((grid_n, 1, h_p), jnp.float32),
        ),
        grid=(grid_n,),
        in_specs=[
            pl.BlockSpec((tile_n, d_in_p), lambda i: (i, 0)),
            _resident_spec((d_in_p, h_p), lambda i: (0, 0), single_buffer_weights),
            _resident_spec((1, h_p), lambda i: (0, 0), single_buffer_weights),
        ],
        out_specs=(
            pl.BlockSpec((tile_n, h_p), lambda i: (i, 0)),
            pl.BlockSpec((1, 1, h_p), lambda i: (i, 0, 0)),
            pl.BlockSpec((1, 1, h_p), lambda i: (i, 0, 0)),
        ),
        compiler_params=pltpu.CompilerParams(
            dimension_semantics=("parallel",),   # no carried state -> megacore
            vmem_limit_bytes=s1_vmem),
        cost_estimate=s1_cost,
    )(x_p, prepared["w1_t"], prepared["b1"])

    # ---- O(grid*H) glue: merge per-tile moments (stable parallel-variance
    # formula), remove the padded rows in closed form, fold BN into Linear2.
    n_pad = n_p - n
    b1_c = prepared["b1"].astype(cdt).astype(jnp.float32)  # exact padded-row h value
    psum = tile_sum[:, 0, :]                               # (grid, H_p)
    pm2 = tile_m2[:, 0, :]
    total_sum = jnp.sum(psum, axis=0, keepdims=True)
    mu_all = total_sum / n_p                               # mean incl. padded rows
    tile_mu = psum / tile_n
    m2_all = (jnp.sum(pm2, axis=0, keepdims=True)
              + tile_n * jnp.sum((tile_mu - mu_all) ** 2, axis=0, keepdims=True))
    mean = (n_p * mu_all - n_pad * b1_c) / n               # true-batch mean
    m2 = m2_all - (mean - b1_c) ** 2 * (n * n_pad / n_p)   # remove padded rows
    var = jnp.maximum(m2 / n, 0.0)                         # biased (training BN)

    scale = prepared["gamma"] * jax.lax.rsqrt(var + BN_EPS)   # (1, H_p)
    shift = prepared["beta"] - mean * scale
    w2_folded = (prepared["w2_t"] * scale.reshape(h_p, 1)).astype(cdt)
    b2_folded = shift @ prepared["w2_t"] + prepared["b2"]     # (1, D_out_p) f32

    # ---- Stage 2: out = h @ W2' + b2'  (pure row-parallel matmul) ----
    s2_cost = pl.CostEstimate(
        flops=int(2 * n_p * h_p * d_out_p), transcendentals=0,
        bytes_accessed=int(_nbytes((n_p, h_p), cdt)
                           + _nbytes((h_p, d_out_p), cdt)
                           + _nbytes((1, d_out_p), jnp.float32)
                           + _nbytes((n_p, d_out_p), out_dtype)))
    out = pl.pallas_call(
        _stage2_kernel,
        out_shape=jax.ShapeDtypeStruct((n_p, d_out_p), out_dtype),
        grid=(grid_n,),
        in_specs=[
            pl.BlockSpec((tile_n, h_p), lambda i: (i, 0)),
            _resident_spec((h_p, d_out_p), lambda i: (0, 0), single_buffer_weights),
            _resident_spec((1, d_out_p), lambda i: (0, 0), single_buffer_weights),
        ],
        out_specs=pl.BlockSpec((tile_n, d_out_p), lambda i: (i, 0)),
        compiler_params=pltpu.CompilerParams(
            dimension_semantics=("parallel",),
            vmem_limit_bytes=s2_vmem),
        cost_estimate=s2_cost,
    )(h, w2_folded, b2_folded)

    return out[:n, :d_out]


def fully_connected_layer(x, prepared, *, row_tile=None, force_two_stage=False):
    """Forward pass.  x: (N, input_dim).  prepared: output of prepare_params()."""
    d_in, _, _ = prepared["dims"]
    cdt = prepared["compute_dtype"]
    d_in_p, h_p = prepared["w1_t"].shape
    d_out_p = prepared["w2_t"].shape[1]
    n = x.shape[0]
    out_dtype = x.dtype

    cap = _vmem_capacity_bytes()
    # bf16 packs 2 rows per sublane: keep row counts (16,128)-tile aligned.
    min_rows = 16 if cdt == jnp.bfloat16 else 8
    if row_tile is None:
        # v7x (64 MiB VMEM) -> 512-row tiles; v5e/v6e (128 MiB) -> 1024.
        row_tile = 512 if cap <= (64 << 20) else 1024

    # -------- fused single-kernel path (small / medium batch) --------
    n_p_f = _round_up(n, min_rows)
    fused_vmem = (_nbytes((n_p_f, d_in_p), cdt) + _nbytes((d_in_p, h_p), cdt)
                  + _nbytes((h_p, d_out_p), jnp.float32)
                  + _nbytes((n_p_f, d_out_p), jnp.float32)
                  + 5 * _nbytes((n_p_f, h_p), jnp.float32)    # h + f32 temporaries
                  + 8 * _nbytes((1, h_p), jnp.float32))
    if not force_two_stage and fused_vmem <= min(cap // 2, 56 << 20):
        x_p = jnp.pad(x, ((0, n_p_f - n), (0, d_in_p - d_in))).astype(cdt)
        return _forward_fused(x_p, prepared, n, n_p_f, out_dtype)

    # -------- two-stage row-tiled path (large batch) --------
    tile_n = _round_up(min(row_tile, _round_up(n, min_rows)), min_rows)
    budget = cap - (16 << 20)
    while tile_n > min_rows and max(_stage_vmem_bytes(
            tile_n, d_in_p, h_p, d_out_p, cdt, out_dtype)) > budget:
        tile_n = max(_round_up(tile_n // 2, min_rows), min_rows)

    n_p = _round_up(n, tile_n)
    x_p = jnp.pad(x, ((0, n_p - n), (0, d_in_p - d_in))).astype(cdt)
    try:
        return _forward_two_stage(x_p, prepared, n, n_p, tile_n, out_dtype,
                                  single_buffer_weights=True)
    except Exception:
        # Fallback for JAX versions where Buffered(1) single-buffering of
        # constant-index blocks is not supported by the TPU pipeliner.
        return _forward_two_stage(x_p, prepared, n, n_p, tile_n, out_dtype,
                                  single_buffer_weights=False)


# --------------------------------------------------------------------------
# PyTorch-layout init (mirrors MLP.__init__) and pure-JAX reference.
# --------------------------------------------------------------------------
def init_params(key, input_dim, hidden_dim, output_dim):
    k1, k2 = jax.random.split(key)
    scale = 1.0 / (hidden_dim ** 0.5)
    return {
        "w1": scale * jax.random.normal(k1, (hidden_dim, input_dim), jnp.float32),
        "b1": jnp.zeros((hidden_dim,), jnp.float32),
        "gamma": jnp.ones((hidden_dim,), jnp.float32),
        "beta": jnp.zeros((hidden_dim,), jnp.float32),
        "w2": scale * jax.random.normal(k2, (output_dim, hidden_dim), jnp.float32),
        "b2": jnp.zeros((output_dim,), jnp.float32),
    }


def _reference(x, p):
    h = x @ p["w1"].T + p["b1"]
    mean = jnp.mean(h, axis=0, keepdims=True)
    var = jnp.mean((h - mean) ** 2, axis=0, keepdims=True)
    h = (h - mean) / jnp.sqrt(var + BN_EPS) * p["gamma"] + p["beta"]
    return h @ p["w2"].T + p["b2"]


if __name__ == "__main__":
    key = jax.random.PRNGKey(0)
    kx, kp, kx2 = jax.random.split(key, 3)

    batch, input_dim, hidden_dim, output_dim = 8, 32, 64, 16
    x = jax.random.normal(kx, (batch, input_dim), jnp.float32)
    params = init_params(kp, input_dim, hidden_dim, output_dim)
    ref = _reference(x, params)

    prep = prepare_params(params, compute_dtype=jnp.float32)

    # Fused single-kernel path (exact f32 semantics).
    out_fused = jax.block_until_ready(fully_connected_layer(x, prep))
    assert out_fused.shape == (batch, output_dim)
    assert jnp.allclose(out_fused, ref, atol=1e-3, rtol=1e-3)

    # Two-stage row-tiled path (multi-tile parallel grid + padded-row stats
    # correction + BN folded into the second matmul).
    batch2 = 41
    x2 = jax.random.normal(kx2, (batch2, input_dim), jnp.float32)
    ref2 = _reference(x2, params)
    out_tiled = jax.block_until_ready(
        fully_connected_layer(x2, prep, row_tile=16, force_two_stage=True))
    assert out_tiled.shape == (batch2, output_dim)
    assert jnp.allclose(out_tiled, ref2, atol=1e-3, rtol=1e-3)

    # bf16 MXU-operand fast path (v5e/v6e/v7x; f32 accumulation + f32 stats).
    prep_bf16 = prepare_params(params, compute_dtype=jnp.bfloat16)
    out_bf16 = jax.block_until_ready(fully_connected_layer(x, prep_bf16))
    assert out_bf16.shape == (batch, output_dim)
    assert jnp.allclose(out_bf16, ref, atol=1e-1, rtol=1e-1)

    # TODO(synk): BatchNorm1d running_mean/running_var buffer updates (a
    # training-time side effect, not part of the returned output) are not
    # materialized here.
    print("KERNEL_OK")
</pallas_src>

<mosaic_0001>
module attributes {stable_mosaic.version = 11 : i64} {
  func.func @_fused_kernel(%arg0: memref<8x128xf32, #tpu.memory_space<vmem>>, %arg1: memref<128x128xf32, #tpu.memory_space<vmem>>, %arg2: memref<1x128xf32, #tpu.memory_space<vmem>>, %arg3: memref<1x128xf32, #tpu.memory_space<vmem>>, %arg4: memref<1x128xf32, #tpu.memory_space<vmem>>, %arg5: memref<128x128xf32, #tpu.memory_space<vmem>>, %arg6: memref<1x128xf32, #tpu.memory_space<vmem>>, %arg7: memref<8x128xf32, #tpu.memory_space<vmem>>) attributes {dimension_semantics = [], scalar_prefetch = 0 : i64, scratch_operands = 0 : i64, tpu.core_type = #tpu.core_type<tc>} {
    %c0 = arith.constant 0 : index
    %c0_0 = arith.constant 0 : index
    %0 = vector.load %arg2[%c0, %c0_0] : memref<1x128xf32, #tpu.memory_space<vmem>>, vector<1x128xf32>
    %c0_1 = arith.constant 0 : index
    %c0_2 = arith.constant 0 : index
    %1 = vector.load %arg0[%c0_1, %c0_2] : memref<8x128xf32, #tpu.memory_space<vmem>>, vector<8x128xf32>
    %c0_3 = arith.constant 0 : index
    %c0_4 = arith.constant 0 : index
    %2 = vector.load %arg1[%c0_3, %c0_4] : memref<128x128xf32, #tpu.memory_space<vmem>>, vector<128x128xf32>
    %cst = arith.constant dense<0.000000e+00> : vector<8x128xf32>
    %3 = tpu.matmul %1, %2, %cst {dimension_numbers = #tpu.dot_dimension_numbers<[1], [0], [0], [1], [0, 0, 1, 1], [], []>} : vector<8x128xf32>, vector<128x128xf32>, vector<8x128xf32> -> vector<8x128xf32>
    %4 = vector.broadcast %0 : vector<1x128xf32> to vector<8x128xf32>
    %5 = arith.addf %3, %4 : vector<8x128xf32>
    %cst_5 = arith.constant dense<0.000000e+00> : vector<128xf32>
    %6 = vector.multi_reduction <add>, %5, %cst_5 [0] : vector<8x128xf32> to vector<128xf32>
    %7 = vector.shape_cast %6 : vector<128xf32> to vector<1x128xf32>
    %cst_6 = arith.constant 0.000000e+00 : f32
    %8 = vector.broadcast %cst_6 : f32 to vector<1x128xf32>
    %9 = arith.mulf %8, %0 : vector<1x128xf32>
    %10 = arith.subf %7, %9 : vector<1x128xf32>
    %cst_7 = arith.constant 1.250000e-01 : f32
    %11 = vector.broadcast %cst_7 : f32 to vector<1x128xf32>
    %12 = arith.mulf %10, %11 : vector<1x128xf32>
    %13 = vector.broadcast %12 : vector<1x128xf32> to vector<8x128xf32>
    %14 = arith.subf %5, %13 : vector<8x128xf32>
    %15 = arith.subf %0, %12 : vector<1x128xf32>
    %16 = arith.mulf %14, %14 : vector<8x128xf32>
    %cst_8 = arith.constant dense<0.000000e+00> : vector<128xf32>
    %17 = vector.multi_reduction <add>, %16, %cst_8 [0] : vector<8x128xf32> to vector<128xf32>
    %18 = vector.shape_cast %17 : vector<128xf32> to vector<1x128xf32>
    %19 = arith.mulf %15, %15 : vector<1x128xf32>
    %cst_9 = arith.constant 0.000000e+00 : f32
    %20 = vector.broadcast %cst_9 : f32 to vector<1x128xf32>
    %21 = arith.mulf %20, %19 : vector<1x128xf32>
    %22 = arith.subf %18, %21 : vector<1x128xf32>
    %cst_10 = arith.constant 1.250000e-01 : f32
    %23 = vector.broadcast %cst_10 : f32 to vector<1x128xf32>
    %24 = arith.mulf %22, %23 : vector<1x128xf32>
    %cst_11 = arith.constant 0.000000e+00 : f32
    %25 = vector.broadcast %cst_11 : f32 to vector<1x128xf32>
    %26 = arith.maximumf %24, %25 : vector<1x128xf32>
    %c0_12 = arith.constant 0 : index
    %c0_13 = arith.constant 0 : index
    %27 = vector.load %arg3[%c0_12, %c0_13] : memref<1x128xf32, #tpu.memory_space<vmem>>, vector<1x128xf32>
    %cst_14 = arith.constant 9.99999974E-6 : f32
    %28 = vector.broadcast %cst_14 : f32 to vector<1x128xf32>
    %29 = arith.addf %26, %28 : vector<1x128xf32>
    %30 = math.rsqrt %29 : vector<1x128xf32>
    %31 = arith.mulf %27, %30 : vector<1x128xf32>
    %32 = vector.broadcast %31 : vector<1x128xf32> to vector<8x128xf32>
    %33 = arith.mulf %14, %32 : vector<8x128xf32>
    %c0_15 = arith.constant 0 : index
    %c0_16 = arith.constant 0 : index
    %34 = vector.load %arg4[%c0_15, %c0_16] : memref<1x128xf32, #tpu.memory_space<vmem>>, vector<1x128xf32>
    %35 = vector.broadcast %34 : vector<1x128xf32> to vector<8x128xf32>
    %36 = arith.addf %33, %35 : vector<8x128xf32>
    %c0_17 = arith.constant 0 : index
    %c0_18 = arith.constant 0 : index
    %37 = vector.load %arg5[%c0_17, %c0_18] : memref<128x128xf32, #tpu.memory_space<vmem>>, vector<128x128xf32>
    %cst_19 = arith.constant dense<0.000000e+00> : vector<8x128xf32>
    %38 = tpu.matmul %36, %37, %cst_19 {dimension_numbers = #tpu.dot_dimension_numbers<[1], [0], [0], [1], [0, 0, 1, 1], [], []>} : vector<8x128xf32>, vector<128x128xf32>, vector<8x128xf32> -> vector<8x128xf32>
    %c0_20 = arith.constant 0 : index
    %c0_21 = arith.constant 0 : index
    %39 = vector.load %arg6[%c0_20, %c0_21] : memref<1x128xf32, #tpu.memory_space<vmem>>, vector<1x128xf32>
    %40 = vector.broadcast %39 : vector<1x128xf32> to vector<8x128xf32>
    %41 = arith.addf %38, %40 : vector<8x128xf32>
    %c0_22 = arith.constant 0 : index
    %c0_23 = arith.constant 0 : index
    %42 = vector.load %arg7[%c0_22, %c0_23] : memref<8x128xf32, #tpu.memory_space<vmem>>, vector<8x128xf32>
    tpu.vector_store %arg7[%c0_22, %c0_23], %41 {strides = array<i32>} : memref<8x128xf32, #tpu.memory_space<vmem>>, vector<8x128xf32>,
    return
  }
}

</mosaic_0001>

<llo_original>
// kernel: tpu_custom_call.1
$region0: #{tpu_custom_call.1}
  #allocation0 [shape = 'u32[]', space=smem, size = 0x4, offset = 0x4, fixed_abs, tag = 'smem constant byte address 0x4 - core index']
  #allocation1 [shape = 'u32[144,128]{1,0:T(1,128)}', space=vmem, size = 0x12000, scoped, tag = 'internal scratch']
  %s0 = inlined_call_operand.hbm [shape: f32[8,128], index: 0, kind: input, shape index: {}]
  %s1 = inlined_call_operand.hbm [shape: f32[128,128], index: 1, kind: input, shape index: {}]
  %s2 = inlined_call_operand.vmem [shape: f32[1,128], index: 2, kind: input, shape index: {}]
  %s3 = inlined_call_operand.vmem [shape: f32[1,128], index: 3, kind: input, shape index: {}]
  %s4 = inlined_call_operand.vmem [shape: f32[1,128], index: 4, kind: input, shape index: {}]
  %s5 = inlined_call_operand.hbm [shape: f32[128,128], index: 5, kind: input, shape index: {}]
  %s6 = inlined_call_operand.vmem [shape: f32[1,128], index: 6, kind: input, shape index: {}]
  %s7 = inlined_call_operand.hbm [shape: f32[8,128], index: 7, kind: output, shape index: {}]
  %s8 = sld [smem:[#allocation0]]
  $region50: #{tpu_custom_call.1} parent=0
    _
  %s10 = ssub.s32 1, %s8
  %s11 = scalar_select 0, %s10, %s8
  $region1: #{tpu_custom_call.1} parent=0
    #allocation2 [shape = 'u8[4096]{0}', space=vmem, size = 0x1000, scoped, tag = 'input window, operand 0, single buffered']
    #allocation3 [shape = 's32[1]{0}', space=sflag, size = 0x4, scoped, tag = 'scoped memory for tpu_custom_call.1']
    #allocation4 [shape = 's32[1]{0}', space=sflag, size = 0x4, scoped, tag = 'scoped memory for tpu_custom_call.1']
    #allocation5 [shape = 'u8[65536]{0}', space=vmem, size = 0x10000, scoped, tag = 'input window, operand 1, single buffered']
    #allocation6 [shape = 's32[1]{0}', space=sflag, size = 0x4, scoped, tag = 'scoped memory for tpu_custom_call.1']
    #allocation7 [shape = 'u8[65536]{0}', space=vmem, size = 0x10000, scoped, tag = 'input window, operand 5, single buffered']
    #allocation8 [shape = 'u8[4096]{0}', space=vmem, size = 0x1000, scoped, tag = 'output window, operand 0, single buffered']
    %12 = vsyncpa [#allocation3], 0
    %13 = vsyncpa [#allocation6], 0
    %14 = vsyncpa [#allocation4], 0
    // Predicated region
    $region2: #{tpu_custom_call.1} parent=1 // pred_check
      _
    $region3: #{tpu_custom_call.1} parent=1 // pred_check_branch
      %16 = sbr.rel (0) target = $region5
    $region4: #{tpu_custom_call.1} parent=1 // pred_region
      %s18 = ssub.s32 128, 128
      %19 = vsyncadd [#allocation3], %s18
      %s21 = sshll.u32 [#allocation2], 4
      %s22 = int_to_ptr.vmem [resolvable:$true] %s21
      %24 = dma.hbm_to_vmem [thread:$0]  %s0, 128, %s22, [#allocation3]
    $region5: #{tpu_custom_call.1} parent=1 // pred_fallthru
      _
    // Predicated region
    $region6: #{tpu_custom_call.1} parent=1 // pred_check
      _
    $region7: #{tpu_custom_call.1} parent=1 // pred_check_branch
      %26 = sbr.rel (0) target = $region9
    $region8: #{tpu_custom_call.1} parent=1 // pred_region
      %s28 = ssub.s32 2048, 2048
      %29 = vsyncadd [#allocation6], %s28
      %s30 = sshll.u32 [#allocation5], 4
      %s31 = int_to_ptr.vmem [resolvable:$true] %s30
      %36 = dma.hbm_to_vmem [thread:$0]  %s1, 2048, %s31, [#allocation6], 128, 128, 8
    $region9: #{tpu_custom_call.1} parent=1 // pred_fallthru
      _
    // Predicated region
    $region10: #{tpu_custom_call.1} parent=1 // pred_check
      _
    $region11: #{tpu_custom_call.1} parent=1 // pred_check_branch
      %38 = sbr.rel (0) target = $region13
    $region12: #{tpu_custom_call.1} parent=1 // pred_region
      _
    $region13: #{tpu_custom_call.1} parent=1 // pred_fallthru
      _
    // Predicated region
    $region14: #{tpu_custom_call.1} parent=1 // pred_check
      _
    $region15: #{tpu_custom_call.1} parent=1 // pred_check_branch
      %40 = sbr.rel (0) target = $region17
    $region16: #{tpu_custom_call.1} parent=1 // pred_region
      _
    $region17: #{tpu_custom_call.1} parent=1 // pred_fallthru
      _
    // Predicated region
    $region18: #{tpu_custom_call.1} parent=1 // pred_check
      _
    $region19: #{tpu_custom_call.1} parent=1 // pred_check_branch
      %42 = sbr.rel (0) target = $region21
    $region20: #{tpu_custom_call.1} parent=1 // pred_region
      _
    $region21: #{tpu_custom_call.1} parent=1 // pred_fallthru
      _
    // Predicated region
    $region22: #{tpu_custom_call.1} parent=1 // pred_check
      _
    $region23: #{tpu_custom_call.1} parent=1 // pred_check_branch
      %44 = sbr.rel (0) target = $region25
    $region24: #{tpu_custom_call.1} parent=1 // pred_region
      %s46 = ssub.s32 2048, 2048
      %47 = vsyncadd [#allocation6], %s46
      %s48 = sshll.u32 [#allocation7], 4
      %s49 = int_to_ptr.vmem [resolvable:$true] %s48
      %54 = dma.hbm_to_vmem [thread:$0]  %s5, 2048, %s49, [#allocation6], 128, 128, 8
    $region25: #{tpu_custom_call.1} parent=1 // pred_fallthru
      _
    // Predicated region
    $region26: #{tpu_custom_call.1} parent=1 // pred_check
      _
    $region27: #{tpu_custom_call.1} parent=1 // pred_check_branch
      %56 = sbr.rel (0) target = $region29
    $region28: #{tpu_custom_call.1} parent=1 // pred_region
      _
    $region29: #{tpu_custom_call.1} parent=1 // pred_fallthru
      _
    // Predicated region
    $region30: #{tpu_custom_call.1} parent=1 // pred_check
      _
    $region31: #{tpu_custom_call.1} parent=1 // pred_check_branch
      %58 = sbr.rel (0) target = $region33
    $region32: #{tpu_custom_call.1} parent=1 // pred_region
      %59 = dma.done [#allocation3], 128
    $region33: #{tpu_custom_call.1} parent=1 // pred_fallthru
      _
    // Predicated region
    $region34: #{tpu_custom_call.1} parent=1 // pred_check
      _
    $region35: #{tpu_custom_call.1} parent=1 // pred_check_branch
      %61 = sbr.rel (0) target = $region37
    $region36: #{tpu_custom_call.1} parent=1 // pred_region
      %62 = dma.done [#allocation6], 2048
    $region37: #{tpu_custom_call.1} parent=1 // pred_fallthru
      _
    // Predicated region
    $region38: #{tpu_custom_call.1} parent=1 // pred_check
      _
    $region39: #{tpu_custom_call.1} parent=1 // pred_check_branch
      %64 = sbr.rel (0) target = $region41
    $region40: #{tpu_custom_call.1} parent=1 // pred_region
      %65 = dma.done [#allocation6], 2048
    $region41: #{tpu_custom_call.1} parent=1 // pred_fallthru
      _
    %v66 = vld [vmem:[%s2] sm:$0x1]
    %v67 = vld [vmem:[#allocation2] sm:$0xff]
    %v68 = vld [vmem:[#allocation5] sm:$0xff]
    %v69 = vld [vmem:[#allocation5 + $0x8] sm:$0xff]
    %v70 = vld [vmem:[#allocation5 + $0x10] sm:$0xff]
    %v71 = vld [vmem:[#allocation5 + $0x18] sm:$0xff]
    %v72 = vld [vmem:[#allocation5 + $0x20] sm:$0xff]
    %v73 = vld [vmem:[#allocation5 + $0x28] sm:$0xff]
    %v74 = vld [vmem:[#allocation5 + $0x30] sm:$0xff]
    %v75 = vld [vmem:[#allocation5 + $0x38] sm:$0xff]
    %v76 = vld [vmem:[#allocation5 + $0x40] sm:$0xff]
    %v77 = vld [vmem:[#allocation5 + $0x48] sm:$0xff]
    %v78 = vld [vmem:[#allocation5 + $0x50] sm:$0xff]
    %v79 = vld [vmem:[#allocation5 + $0x58] sm:$0xff]
    %v80 = vld [vmem:[#allocation5 + $0x60] sm:$0xff]
    %v81 = vld [vmem:[#allocation5 + $0x68] sm:$0xff]
    %v82 = vld [vmem:[#allocation5 + $0x70] sm:$0xff]
    %v83 = vld [vmem:[#allocation5 + $0x78] sm:$0xff]
    %v85 = vlaneseq
    %v86 = vshrl.u32 %v85, 7
    %v87 = vsub.s32 0, %v86
    %v88 = vrot.slane %v66, %v87
    %90 = vmatprep.subr.mxu0 0.0
    %91 = vmatpush1.msra.mxu0 %v68
    %92 = vmatprep.subr.mxu0 0.0
    %93 = vmatpush1.msra.mxu0 %v69
    %94 = vmatprep.subr.mxu0 0.0
    %95 = vmatpush1.msra.mxu0 %v70
    %96 = vmatprep.subr.mxu0 0.0
    %97 = vmatpush1.msra.mxu0 %v71
    %98 = vmatprep.subr.mxu0 0.0
    %99 = vmatpush1.msra.mxu0 %v72
    %100 = vmatprep.subr.mxu0 0.0
    %101 = vmatpush1.msra.mxu0 %v73
    %102 = vmatprep.subr.mxu0 0.0
    %103 = vmatpush1.msra.mxu0 %v74
    %104 = vmatprep.subr.mxu0 0.0
    %105 = vmatpush1.msra.mxu0 %v75
    %106 = vmatprep.subr.mxu0 0.0
    %107 = vmatpush1.msra.mxu0 %v76
    %108 = vmatprep.subr.mxu0 0.0
    %109 = vmatpush1.msra.mxu0 %v77
    %110 = vmatprep.subr.mxu0 0.0
    %111 = vmatpush1.msra.mxu0 %v78
    %112 = vmatprep.subr.mxu0 0.0
    %113 = vmatpush1.msra.mxu0 %v79
    %114 = vmatprep.subr.mxu0 0.0
    %115 = vmatpush1.msra.mxu0 %v80
    %116 = vmatprep.subr.mxu0 0.0
    %117 = vmatpush1.msra.mxu0 %v81
    %118 = vmatprep.subr.mxu0 0.0
    %119 = vmatpush1.msra.mxu0 %v82
    %120 = vmatprep.subr.mxu0 0.0
    %121 = vmatpush1.msra.mxu0 %v83
    %122 = vmatprep.subr.mxu0 0.0
    %123 = vmatpush1.msra.mxu0 0.0
    %124 = vmatprep.subr.mxu0 0.0
    %125 = vmatpush1.msra.mxu0 0.0
    %126 = vmatprep.subr.mxu0 0.0
    %127 = vmatpush1.msra.mxu0 0.0
    %128 = vmatprep.subr.mxu0 0.0
    %129 = vmatpush1.msra.mxu0 0.0
    %130 = vmatprep.subr.mxu0 0.0
    %131 = vmatpush1.msra.mxu0 0.0
    %132 = vmatprep.subr.mxu0 0.0
    %133 = vmatpush1.msra.mxu0 0.0
    %134 = vmatprep.subr.mxu0 0.0
    %135 = vmatpush1.msra.mxu0 0.0
    %136 = vmatprep.subr.mxu0 0.0
    %137 = vmatpush1.msra.mxu0 0.0
    %138 = vmatprep.subr.mxu0 0.0
    %139 = vmatpush1.msra.mxu0 0.0
    %140 = vmatprep.subr.mxu0 0.0
    %141 = vmatpush1.msra.mxu0 0.0
    %142 = vmatprep.subr.mxu0 0.0
    %143 = vmatpush1.msra.mxu0 0.0
    %144 = vmatprep.subr.mxu0 0.0
    %145 = vmatpush1.msra.mxu0 0.0
    %146 = vmatprep.subr.mxu0 0.0
    %147 = vmatpush1.msra.mxu0 0.0
    %148 = vmatprep.subr.mxu0 0.0
    %149 = vmatpush1.msra.mxu0 0.0
    %150 = vmatprep.subr.mxu0 0.0
    %151 = vmatpush1.msra.mxu0 0.0
    %152 = vmatprep.subr.mxu0 0.0
    %153 = vmatpush1.msra.mxu0 0.0
    %154 = vmatprep.mubr.f32.mxu0 0.0
    %155 = vmatmul.mubr.f32.gmra.mrb[0].mxu0 %v67
    %v156 = vpop.f32.mrb[0].mxu0
    %v157 = vadd.f32 %v88, %v156
    %v158 = vpop.f32.mrb[0].mxu0
    %159 = vdwg.mxu0
    %v160 = vrot.slane %v157, 4
    %v161 = vadd.f32 %v157, %v160
    %v162 = vrot.slane %v161, 2
    %v163 = vadd.f32 %v161, %v162
    %v164 = vrot.slane %v163, 1
    %v165 = vadd.f32 %v163, %v164
    %v166 = vmul.f32 %v66, 0.0
    %v167 = vsub.f32 %v165, %v166
    %v168 = vmul.f32 %v167, 0.125
    %v169 = vlaneseq
    %v170 = vshrl.u32 %v169, 7
    %v171 = vsub.s32 0, %v170
    %v172 = vrot.slane %v168, %v171
    %v173 = vsub.f32 %v157, %v172
    %v174 = vsub.f32 %v66, %v168
    %v175 = vmul.f32 %v173, %v173
    %v176 = vrot.slane %v175, 4
    %v177 = vadd.f32 %v175, %v176
    %v178 = vrot.slane %v177, 2
    %v179 = vadd.f32 %v177, %v178
    %v180 = vrot.slane %v179, 1
    %v181 = vadd.f32 %v179, %v180
    %v182 = vmul.f32 %v174, %v174
    %v183 = vmul.f32 %v182, 0.0
    %v184 = vsub.f32 %v181, %v183
    %v185 = vmul.f32 %v184, 0.125
    %v186 = vmax.f32 %v185, 0.0
    %v187 = vld [vmem:[%s3] sm:$0x1]
    %v188 = vadd.f32 %v186, 1e-05
    %v189 = vrsqrt.pop %v188
    %v190 = vmul.f32 %v187, %v189
    %v192 = vlaneseq
    %v193 = vshrl.u32 %v192, 7
    %v194 = vsub.s32 0, %v193
    %v195 = vrot.slane %v190, %v194
    %v197 = vmul.f32 %v173, %v195
    %v198 = vld [vmem:[%s4] sm:$0x1]
    %v200 = vlaneseq
    %v201 = vshrl.u32 %v200, 7
    %v202 = vsub.s32 0, %v201
    %v203 = vrot.slane %v198, %v202
    %v205 = vadd.f32 %v197, %v203
    %v206 = vld [vmem:[#allocation7] sm:$0xff]
    %v207 = vld [vmem:[#allocation7 + $0x8] sm:$0xff]
    %v208 = vld [vmem:[#allocation7 + $0x10] sm:$0xff]
    %v209 = vld [vmem:[#allocation7 + $0x18] sm:$0xff]
    %v210 = vld [vmem:[#allocation7 + $0x20] sm:$0xff]
    %v211 = vld [vmem:[#allocation7 + $0x28] sm:$0xff]
    %v212 = vld [vmem:[#allocation7 + $0x30] sm:$0xff]
    %v213 = vld [vmem:[#allocation7 + $0x38] sm:$0xff]
    %v214 = vld [vmem:[#allocation7 + $0x40] sm:$0xff]
    %v215 = vld [vmem:[#allocation7 + $0x48] sm:$0xff]
    %v216 = vld [vmem:[#allocation7 + $0x50] sm:$0xff]
    %v217 = vld [vmem:[#allocation7 + $0x58] sm:$0xff]
    %v218 = vld [vmem:[#allocation7 + $0x60] sm:$0xff]
    %v219 = vld [vmem:[#allocation7 + $0x68] sm:$0xff]
    %v220 = vld [vmem:[#allocation7 + $0x70] sm:$0xff]
    %v221 = vld [vmem:[#allocation7 + $0x78] sm:$0xff]
    %v222 = vld [vmem:[%s6] sm:$0x1]
    %v224 = vlaneseq
    %v225 = vshrl.u32 %v224, 7
    %v226 = vsub.s32 0, %v225
    %v227 = vrot.slane %v222, %v226
    %229 = vmatprep.subr.mxu0 0.0
    %230 = vmatpush1.msra.mxu0 %v206
    %231 = vmatprep.subr.mxu0 0.0
    %232 = vmatpush1.msra.mxu0 %v207
    %233 = vmatprep.subr.mxu0 0.0
    %234 = vmatpush1.msra.mxu0 %v208
    %235 = vmatprep.subr.mxu0 0.0
    %236 = vmatpush1.msra.mxu0 %v209
    %237 = vmatprep.subr.mxu0 0.0
    %238 = vmatpush1.msra.mxu0 %v210
    %239 = vmatprep.subr.mxu0 0.0
    %240 = vmatpush1.msra.mxu0 %v211
    %241 = vmatprep.subr.mxu0 0.0
    %242 = vmatpush1.msra.mxu0 %v212
    %243 = vmatprep.subr.mxu0 0.0
    %244 = vmatpush1.msra.mxu0 %v213
    %245 = vmatprep.subr.mxu0 0.0
    %246 = vmatpush1.msra.mxu0 %v214
    %247 = vmatprep.subr.mxu0 0.0
    %248 = vmatpush1.msra.mxu0 %v215
    %249 = vmatprep.subr.mxu0 0.0
    %250 = vmatpush1.msra.mxu0 %v216
    %251 = vmatprep.subr.mxu0 0.0
    %252 = vmatpush1.msra.mxu0 %v217
    %253 = vmatprep.subr.mxu0 0.0
    %254 = vmatpush1.msra.mxu0 %v218
    %255 = vmatprep.subr.mxu0 0.0
    %256 = vmatpush1.msra.mxu0 %v219
    %257 = vmatprep.subr.mxu0 0.0
    %258 = vmatpush1.msra.mxu0 %v220
    %259 = vmatprep.subr.mxu0 0.0
    %260 = vmatpush1.msra.mxu0 %v221
    %261 = vmatprep.subr.mxu0 0.0
    %262 = vmatpush1.msra.mxu0 0.0
    %263 = vmatprep.subr.mxu0 0.0
    %264 = vmatpush1.msra.mxu0 0.0
    %265 = vmatprep.subr.mxu0 0.0
    %266 = vmatpush1.msra.mxu0 0.0
    %267 = vmatprep.subr.mxu0 0.0
    %268 = vmatpush1.msra.mxu0 0.0
    %269 = vmatprep.subr.mxu0 0.0
    %270 = vmatpush1.msra.mxu0 0.0
    %271 = vmatprep.subr.mxu0 0.0
    %272 = vmatpush1.msra.mxu0 0.0
    %273 = vmatprep.subr.mxu0 0.0
    %274 = vmatpush1.msra.mxu0 0.0
    %275 = vmatprep.subr.mxu0 0.0
    %276 = vmatpush1.msra.mxu0 0.0
    %277 = vmatprep.subr.mxu0 0.0
    %278 = vmatpush1.msra.mxu0 0.0
    %279 = vmatprep.subr.mxu0 0.0
    %280 = vmatpush1.msra.mxu0 0.0
    %281 = vmatprep.subr.mxu0 0.0
    %282 = vmatpush1.msra.mxu0 0.0
    %283 = vmatprep.subr.mxu0 0.0
    %284 = vmatpush1.msra.mxu0 0.0
    %285 = vmatprep.subr.mxu0 0.0
    %286 = vmatpush1.msra.mxu0 0.0
    %287 = vmatprep.subr.mxu0 0.0
    %288 = vmatpush1.msra.mxu0 0.0
    %289 = vmatprep.subr.mxu0 0.0
    %290 = vmatpush1.msra.mxu0 0.0
    %291 = vmatprep.subr.mxu0 0.0
    %292 = vmatpush1.msra.mxu0 0.0
    %293 = vmatprep.mubr.f32.mxu0 0.0
    %294 = vmatmul.mubr.f32.gmra.mrb[0].mxu0 %v205
    %v295 = vpop.f32.mrb[0].mxu0
    %v296 = vadd.f32 %v227, %v295
    %v297 = vpop.f32.mrb[0].mxu0
    %298 = vdwg.mxu0
    %299 = vst [vmem:[#allocation8] sm:$0xff] %v296
    // Predicated region
    $region42: #{tpu_custom_call.1} parent=1 // pred_check
      _
    $region43: #{tpu_custom_call.1} parent=1 // pred_check_branch
      %301 = sbr.rel (0) target = $region45
    $region44: #{tpu_custom_call.1} parent=1 // pred_region
      %s303 = ssub.s32 128, 128
      %304 = vsyncadd [#allocation4], %s303
      %s306 = sshll.u32 [#allocation8], 4
      %s307 = int_to_ptr.vmem [resolvable:$true] %s306
      %309 = dma.vmem_to_hbm [thread:$0]  %s307, 128, %s7, [#allocation4]
    $region45: #{tpu_custom_call.1} parent=1 // pred_fallthru
      _
    // Predicated region
    $region46: #{tpu_custom_call.1} parent=1 // pred_check
      _
    $region47: #{tpu_custom_call.1} parent=1 // pred_check_branch
      %311 = sbr.rel (0) target = $region49
    $region48: #{tpu_custom_call.1} parent=1 // pred_region
      %312 = dma.done [#allocation4], 128
    $region49: #{tpu_custom_call.1} parent=1 // pred_fallthru
      _
    %313 = vsyncpa [#allocation3], 1
    %314 = vsyncpa [#allocation6], 1
    %315 = vsyncpa [#allocation4], 1

</llo_original>
